<compile_context>
chip_gen: v5e
topology: v5e:2x2
jax: 0.10.0
libtpu: 0.0.40
codegen_flags: <defaults>
</compile_context>

<pallas_src>
import functools

import jax
import jax.numpy as jnp
from jax.experimental import pallas as pl
from jax.experimental.pallas import tpu as pltpu

EPS = 1e-6
NEG_INF = -1e30                   # finite "-inf": avoids inf-inf NaN hazards


def _vmem_limit_bytes():
    """Generation-aware VMEM budget: ~75% of capacity, capped at 100 MB."""
    cap = 128 << 20
    try:
        info = pltpu.get_tpu_info()
        cap = int(getattr(info, "vmem_capacity_bytes", cap) or cap)
    except Exception:
        pass
    return max(32 << 20, min(int(cap * 0.75), 100 << 20))


def _pick_tile(dim, preferred, align):
    """Largest multiple of `align` that divides `dim` and is <= preferred, else full dim."""
    if dim <= preferred:
        return dim
    t = (preferred // align) * align
    while t >= align:
        if dim % t == 0:
            return t
        t -= align
    # TODO(synk): fallback keeps the whole dim resident; add a padding path for
    # awkward (prime-ish) dims instead of silently growing the block.
    return dim


def _rmsnorm(x, gamma):
    ms = jnp.mean(x * x, axis=-1, keepdims=True)
    return x * jax.lax.rsqrt(ms + EPS) * gamma


# ------------------- kernel 1: RMSNorm + fused per-head QKV --------------------
def qkv_proj_kernel(x_ref, g_ref, w_ref, q_ref, k_ref, v_ref, xn_sc, *, scale):
    """grid = (B, T//tq, n_head).  One (tq,C)x(C,3D) GEMM per step (fused q|k|v
    columns for one head).  Normalized activations cached once per (b, t-block)
    at h==0.  The 1/sqrt(D) softmax scale is folded into q here."""
    h = pl.program_id(2)

    @pl.when(h == 0)
    def _():
        xn_sc[...] = _rmsnorm(x_ref[0], g_ref[...]).astype(jnp.bfloat16)

    xn = xn_sc[...]                                   # (tq, C) bf16
    D = q_ref.shape[-1]
    qkv = jnp.dot(xn, w_ref[0], preferred_element_type=jnp.float32)   # (tq, 3D) f32
    q_ref[0, 0] = (qkv[:, :D] * scale).astype(jnp.bfloat16)
    k_ref[0, 0] = qkv[:, D:2 * D].astype(jnp.bfloat16)
    v_ref[0, 0] = qkv[:, 2 * D:].astype(jnp.bfloat16)


# --------------------- kernel 2: flash causal attention ------------------------
def flash_attn_kernel(q_ref, k_ref, v_ref, o_ref, m_sc, l_sc, acc_sc, *, tq, tk):
    """grid = (B, T//tq, T//tk).  q/k/v are head-major (1, H, t, D) blocks; heads
    are indexed on a leading dim (no lane slicing).  Online-softmax state persists
    across the kv axis; above-diagonal blocks are skipped (and their DMA is
    skipped via clamped index_maps on the wrapper side).  Emits normalized head
    outputs only -- the output projection lives in a separate column-tiled kernel."""
    qi = pl.program_id(1)
    ki = pl.program_id(2)
    n_kv = pl.num_programs(2)
    n_head = q_ref.shape[1]

    @pl.when(ki == 0)
    def _():
        m_sc[...] = jnp.full(m_sc.shape, NEG_INF, jnp.float32)
        l_sc[...] = jnp.zeros(l_sc.shape, jnp.float32)
        acc_sc[...] = jnp.zeros(acc_sc.shape, jnp.float32)

    @pl.when(ki * tk <= qi * tq + (tq - 1))
    def _():
        row = qi * tq + jax.lax.broadcasted_iota(jnp.int32, (tq, tk), 0)
        col = ki * tk + jax.lax.broadcasted_iota(jnp.int32, (tq, tk), 1)
        causal = col <= row

        for h in range(n_head):                       # static unroll over heads
            qh = q_ref[0, h]                          # (tq, D) bf16, lane-contiguous
            kh = k_ref[0, h]                          # (tk, D)
            vh = v_ref[0, h]                          # (tk, D)
            # (tq, tk) scores; q is already scaled by 1/sqrt(D).
            s = jax.lax.dot_general(qh, kh, (((1,), (1,)), ((), ())),
                                    preferred_element_type=jnp.float32)
            s = jnp.where(causal, s, NEG_INF)
            m_prev = m_sc[h]
            l_prev = l_sc[h]
            m_new = jnp.maximum(m_prev, jnp.max(s, axis=-1, keepdims=True))
            alpha = jnp.exp(m_prev - m_new)
            p = jnp.exp(s - m_new)
            l_sc[h] = alpha * l_prev + jnp.sum(p, axis=-1, keepdims=True)
            acc_sc[h] = alpha * acc_sc[h] + jnp.dot(
                p.astype(jnp.bfloat16), vh, preferred_element_type=jnp.float32)
            m_sc[h] = m_new

    @pl.when(ki == n_kv - 1)
    def _():
        for h in range(n_head):
            inv_l = pl.reciprocal(l_sc[h], approx=True)        # EUP slot: ~free
            o_ref[0, h] = (acc_sc[h] * inv_l).astype(o_ref.dtype)


# ------------- kernel 3: head flatten + output projection + residual -----------
def attn_proj_kernel(x_ref, y_ref, wp_ref, o_ref, yflat_sc):
    """grid = (B, T//tq, C//tn).  Heads are flattened once per (b, t-block) into
    a (tq, C) bf16 VMEM scratch, then a single K=C GEMM per output-column tile
    plus the residual add."""
    ni = pl.program_id(2)
    n_head = y_ref.shape[1]
    D = y_ref.shape[-1]

    @pl.when(ni == 0)
    def _():
        for h in range(n_head):                       # head-major flatten (once)
            yflat_sc[:, h * D:(h + 1) * D] = y_ref[0, h]

    o_ref[0] = x_ref[0] + jnp.dot(yflat_sc[...], wp_ref[...],
                                  preferred_element_type=jnp.float32)


# ------------------- kernel 4: RMSNorm + SwiGLU MLP + residual ------------------
def mlp_kernel(x_ref, g_ref, wug_ref, wdn_ref, o_ref, xn_sc, acc_sc):
    """grid = (B, T//tq, hidden//th).  Each step does one fused (tq,C)x(C,2*th)
    up|gate GEMM (tile-interleaved weight), a lane split for silu(gate)*up, and
    a down-proj K-accumulation into f32 VMEM scratch."""
    hi = pl.program_id(2)
    n_h = pl.num_programs(2)

    @pl.when(hi == 0)
    def _():
        xn_sc[...] = _rmsnorm(x_ref[0], g_ref[...]).astype(jnp.bfloat16)
        acc_sc[...] = jnp.zeros(acc_sc.shape, jnp.float32)

    xn = xn_sc[...]
    ug = jnp.dot(xn, wug_ref[...], preferred_element_type=jnp.float32)  # (tq, 2*th)
    th = ug.shape[-1] // 2
    u = ug[:, :th]                                    # x1 ("up")
    g = ug[:, th:]                                    # x2 ("gate")
    hact = (jax.nn.silu(g) * u).astype(jnp.bfloat16)  # SwiGLU: silu(x2) * x1
    acc_sc[...] += jnp.dot(hact, wdn_ref[...], preferred_element_type=jnp.float32)

    # TODO(synk): dropout is identity in eval mode; training-mode dropout not implemented.
    @pl.when(hi == n_h - 1)
    def _():
        o_ref[0] = x_ref[0] + acc_sc[...]             # residual add


# --------------------------------- wrapper --------------------------------------
def transformer_block(x, params, *, n_head):
    """x: (B, T, C) float32 residual stream.  Weights are cast to bf16 for the MXU;
    all matmuls accumulate in f32; RMSNorm stats and the residual stay f32."""
    B, T, C = x.shape
    assert C % n_head == 0
    D = C // n_head
    hidden = 4 * C
    bf16 = jnp.bfloat16
    scale = 1.0 / (D ** 0.5)

    vmem_limit = _vmem_limit_bytes()
    big_vmem = vmem_limit >= (72 << 20)               # v5e/v6e: 128 MiB physical

    # bf16 time tiles aligned to 16 (sublane packing); weight tiles to 128 lanes.
    tq = _pick_tile(T, 256 if big_vmem else 128, 16)  # query / time tile
    tk = _pick_tile(T, 512 if big_vmem else 256, 16)  # kv tile
    tn = _pick_tile(C, 1024 if big_vmem else 512, 128)        # proj output-column tile
    th = _pick_tile(hidden, 1024 if big_vmem else 512, 128)   # MLP hidden tile
    n_t, n_q, n_kv = T // tq, T // tq, T // tk
    n_cn, n_h = C // tn, hidden // th

    # ---- weight repack (in a real deployment this is done once, offline) ----
    # fused per-head QKV: (n_head, C, 3*D) with columns [q | k | v]
    wq = params["w_q"].astype(bf16).reshape(C, n_head, D)
    wk = params["w_k"].astype(bf16).reshape(C, n_head, D)
    wv = params["w_v"].astype(bf16).reshape(C, n_head, D)
    w_qkv = jnp.transpose(jnp.concatenate([wq, wk, wv], axis=-1), (1, 0, 2))
    # output projection: rows are the head-major flattened head outputs
    wp = params["w_proj"].astype(bf16)                # (C, C)
    # tile-interleaved up|gate weight: columns [hi*2*th : hi*2*th+th] = up tile hi
    wu3 = params["w_up"].astype(bf16).reshape(C, n_h, th)
    wg3 = params["w_gate"].astype(bf16).reshape(C, n_h, th)
    w_ug = jnp.concatenate([wu3, wg3], axis=-1).reshape(C, 2 * hidden)
    wdn = params["w_down"].astype(bf16)               # (hidden, C)
    g1, g2 = params["ln1_g"], params["ln2_g"]

    sem3 = ("parallel", "parallel", "arbitrary")

    # ---- 1) RMSNorm + fused per-head QKV projection (head-major bf16 outputs) ----
    qkv_fn = pl.pallas_call(
        functools.partial(qkv_proj_kernel, scale=scale),
        out_shape=tuple(jax.ShapeDtypeStruct((B, n_head, T, D), bf16) for _ in range(3)),
        grid=(B, n_t, n_head),
        in_specs=[
            pl.BlockSpec((1, tq, C), lambda b, ti, h: (b, ti, 0)),
            pl.BlockSpec((1, C), lambda b, ti, h: (0, 0)),
            pl.BlockSpec((1, C, 3 * D), lambda b, ti, h: (h, 0, 0)),
        ],
        out_specs=tuple(pl.BlockSpec((1, 1, tq, D), lambda b, ti, h: (b, h, ti, 0))
                        for _ in range(3)),
        scratch_shapes=[pltpu.VMEM((tq, C), bf16)],
        compiler_params=pltpu.CompilerParams(
            dimension_semantics=sem3, vmem_limit_bytes=vmem_limit),
        cost_estimate=pl.CostEstimate(
            flops=int(2 * B * T * C * 3 * C),
            transcendentals=int(B * T),
            bytes_accessed=int(B * T * C * 4 + 3 * C * C * 2 + 3 * B * T * C * 2)),
    )
    q, k, v = qkv_fn(x, g1, w_qkv)

    # ---- 2) flash-style causal attention (heads on a leading dim) ----
    def kv_idx(b, qi, ki):
        # clamp above-diagonal blocks to the diagonal -> Pallas skips the DMA
        return (b, 0, jnp.minimum(ki, (qi * tq + tq - 1) // tk), 0)

    attn_fn = pl.pallas_call(
        functools.partial(flash_attn_kernel, tq=tq, tk=tk),
        out_shape=jax.ShapeDtypeStruct((B, n_head, T, D), bf16),
        grid=(B, n_q, n_kv),
        in_specs=[
            pl.BlockSpec((1, n_head, tq, D), lambda b, qi, ki: (b, 0, qi, 0)),
            pl.BlockSpec((1, n_head, tk, D), kv_idx),
            pl.BlockSpec((1, n_head, tk, D), kv_idx),
        ],
        out_specs=pl.BlockSpec((1, n_head, tq, D), lambda b, qi, ki: (b, 0, qi, 0)),
        scratch_shapes=[
            pltpu.VMEM((n_head, tq, 1), jnp.float32),   # running max
            pltpu.VMEM((n_head, tq, 1), jnp.float32),   # running denom
            pltpu.VMEM((n_head, tq, D), jnp.float32),   # unnormalized accumulator
        ],
        compiler_params=pltpu.CompilerParams(
            dimension_semantics=sem3, vmem_limit_bytes=vmem_limit),
        cost_estimate=pl.CostEstimate(
            flops=int(4 * B * T * T * C),
            transcendentals=int(B * n_head * T * T),
            bytes_accessed=int(4 * B * T * C * 2)),
    )
    y_heads = attn_fn(q, k, v)

    # ---- 3) head flatten + output projection + residual (column-tiled K=C GEMM) ----
    proj_fn = pl.pallas_call(
        attn_proj_kernel,
        out_shape=jax.ShapeDtypeStruct((B, T, C), jnp.float32),
        grid=(B, n_t, n_cn),
        in_specs=[
            pl.BlockSpec((1, tq, tn), lambda b, ti, ni: (b, ti, ni)),      # residual x
            pl.BlockSpec((1, n_head, tq, D), lambda b, ti, ni: (b, 0, ti, 0)),
            pl.BlockSpec((C, tn), lambda b, ti, ni: (0, ni)),              # w_proj cols
        ],
        out_specs=pl.BlockSpec((1, tq, tn), lambda b, ti, ni: (b, ti, ni)),
        scratch_shapes=[pltpu.VMEM((tq, C), bf16)],
        compiler_params=pltpu.CompilerParams(
            dimension_semantics=sem3, vmem_limit_bytes=vmem_limit),
        cost_estimate=pl.CostEstimate(
            flops=int(2 * B * T * C * C),
            transcendentals=0,
            bytes_accessed=int(2 * B * T * C * 4 + B * T * C * 2 + C * C * 2)),
    )
    x = proj_fn(x, y_heads, wp)

    # ---- 4) RMSNorm + SwiGLU MLP + residual ----
    mlp_fn = pl.pallas_call(
        mlp_kernel,
        out_shape=jax.ShapeDtypeStruct((B, T, C), jnp.float32),
        grid=(B, n_t, n_h),
        in_specs=[
            pl.BlockSpec((1, tq, C), lambda b, ti, hi: (b, ti, 0)),
            pl.BlockSpec((1, C), lambda b, ti, hi: (0, 0)),
            pl.BlockSpec((C, 2 * th), lambda b, ti, hi: (0, hi)),    # [up | gate] tile
            pl.BlockSpec((th, C), lambda b, ti, hi: (hi, 0)),        # w_down tile
        ],
        out_specs=pl.BlockSpec((1, tq, C), lambda b, ti, hi: (b, ti, 0)),
        scratch_shapes=[pltpu.VMEM((tq, C), bf16),
                        pltpu.VMEM((tq, C), jnp.float32)],
        compiler_params=pltpu.CompilerParams(
            dimension_semantics=sem3, vmem_limit_bytes=vmem_limit),
        cost_estimate=pl.CostEstimate(
            flops=int(6 * B * T * C * hidden),
            transcendentals=int(B * T * hidden),
            bytes_accessed=int(2 * B * T * C * 4 + 3 * C * hidden * 2)),
    )
    x = mlp_fn(x, g2, w_ug, wdn)
    return x


# ---------------- pure-JAX reference (same bf16 matmul discipline) ----------------
def reference_block(x, params, *, n_head):
    bf16, f32 = jnp.bfloat16, jnp.float32
    B, T, C = x.shape
    D = C // n_head

    def rms(v, g):
        return v * jax.lax.rsqrt(jnp.mean(v * v, axis=-1, keepdims=True) + EPS) * g

    wq, wk, wv = (params[n].astype(bf16) for n in ("w_q", "w_k", "w_v"))
    wp = params["w_proj"].astype(bf16)
    wu, wg, wd = (params[n].astype(bf16) for n in ("w_up", "w_gate", "w_down"))

    # attention
    xn = rms(x, params["ln1_g"][0]).astype(bf16)
    q = jnp.einsum("btc,cd->btd", xn, wq, preferred_element_type=f32).astype(bf16)
    k = jnp.einsum("btc,cd->btd", xn, wk, preferred_element_type=f32).astype(bf16)
    v = jnp.einsum("btc,cd->btd", xn, wv, preferred_element_type=f32).astype(bf16)
    qh = q.reshape(B, T, n_head, D).transpose(0, 2, 1, 3)
    kh = k.reshape(B, T, n_head, D).transpose(0, 2, 1, 3)
    vh = v.reshape(B, T, n_head, D).transpose(0, 2, 1, 3)
    s = jnp.einsum("bhqd,bhkd->bhqk", qh, kh, preferred_element_type=f32) / (D ** 0.5)
    s = jnp.where(jnp.tril(jnp.ones((T, T), bool)), s, NEG_INF)
    p = jax.nn.softmax(s, axis=-1)
    y = jnp.einsum("bhqk,bhkd->bhqd", p.astype(bf16), vh, preferred_element_type=f32)
    y = y.transpose(0, 2, 1, 3).reshape(B, T, C).astype(bf16)
    x = x + jnp.einsum("btc,cd->btd", y, wp, preferred_element_type=f32)

    # mlp (SwiGLU: silu(x2) * x1; x1 <- w_up, x2 <- w_gate)
    xn = rms(x, params["ln2_g"][0]).astype(bf16)
    u = jnp.einsum("btc,ch->bth", xn, wu, preferred_element_type=f32)
    g = jnp.einsum("btc,ch->bth", xn, wg, preferred_element_type=f32)
    h = (jax.nn.silu(g) * u).astype(bf16)
    x = x + jnp.einsum("bth,hc->btc", h, wd, preferred_element_type=f32)
    return x


if __name__ == "__main__":
    B, T, C, n_head = 2, 8, 32, 4
    hidden = 4 * C
    scale = 2.0 / (C ** 0.5)

    key = jax.random.PRNGKey(0)
    ks = jax.random.split(key, 10)

    params = {
        # RMSNorm gains (stored as (1, C) for 2D VMEM tiles)
        "ln1_g": (1.0 + 0.1 * jax.random.normal(ks[0], (1, C))).astype(jnp.float32),
        "ln2_g": (1.0 + 0.1 * jax.random.normal(ks[1], (1, C))).astype(jnp.float32),
        # attention weights, (in, out) layout, bias=False
        "w_q": (scale * jax.random.normal(ks[2], (C, C))).astype(jnp.float32),
        "w_k": (scale * jax.random.normal(ks[3], (C, C))).astype(jnp.float32),
        "w_v": (scale * jax.random.normal(ks[4], (C, C))).astype(jnp.float32),
        "w_proj": (scale * jax.random.normal(ks[5], (C, C))).astype(jnp.float32),
        # MLP: split of gate_up_proj (in,out) -> w_up = [:, :hidden] (x1), w_gate = [:, hidden:] (x2)
        "w_up": (scale * jax.random.normal(ks[6], (C, hidden))).astype(jnp.float32),
        "w_gate": (scale * jax.random.normal(ks[7], (C, hidden))).astype(jnp.float32),
        "w_down": (scale * jax.random.normal(ks[8], (hidden, C))).astype(jnp.float32),
    }

    x = jax.random.normal(ks[9], (B, T, C), dtype=jnp.float32)

    out = jax.block_until_ready(transformer_block(x, params, n_head=n_head))
    ref = reference_block(x, params, n_head=n_head)

    assert out.shape == (B, T, C)
    # tolerance reflects bf16 matmuls + approx reciprocal + online-softmax ordering
    assert jnp.allclose(out, ref, atol=2e-1, rtol=5e-2), "mismatch vs. reference"

    print("KERNEL_OK")
</pallas_src>

<mosaic_0001>
module attributes {stable_mosaic.version = 11 : i64} {
  func.func @qkv_proj_kernel(%arg0: i32, %arg1: i32, %arg2: i32, %arg3: memref<1x8x32xf32, #tpu.memory_space<vmem>>, %arg4: memref<1x32xf32, #tpu.memory_space<vmem>>, %arg5: memref<1x32x24xbf16, #tpu.memory_space<vmem>>, %arg6: memref<1x1x8x8xbf16, #tpu.memory_space<vmem>>, %arg7: memref<1x1x8x8xbf16, #tpu.memory_space<vmem>>, %arg8: memref<1x1x8x8xbf16, #tpu.memory_space<vmem>>, %arg9: memref<8x32xbf16, #tpu.memory_space<vmem>>) attributes {dimension_semantics = [#tpu.dimension_semantics<parallel>, #tpu.dimension_semantics<parallel>, #tpu.dimension_semantics<arbitrary>], iteration_bounds = array<i64: 2, 1, 4>, scalar_prefetch = 0 : i64, scratch_operands = 1 : i64, tpu.core_type = #tpu.core_type<tc>, window_params = [{transform_indices = @transform_0, window_bounds = array<i64: 1, 8, 32>}, {pipeline_mode = #tpu.pipeline_mode<synchronous>, transform_indices = @transform_1, window_bounds = array<i64: 1, 32>}, {transform_indices = @transform_2, window_bounds = array<i64: 1, 32, 24>}, {transform_indices = @transform_3, window_bounds = array<i64: 1, 1, 8, 8>}, {transform_indices = @transform_4, window_bounds = array<i64: 1, 1, 8, 8>}, {transform_indices = @transform_5, window_bounds = array<i64: 1, 1, 8, 8>}]} {
    %c0_i32 = arith.constant 0 : i32
    %0 = arith.cmpi eq, %arg2, %c0_i32 : i32
    %1 = arith.extui %0 : i1 to i32
    %c0_i32_0 = arith.constant 0 : i32
    %2 = arith.cmpi ne, %1, %c0_i32_0 : i32
    scf.if %2 {
      %c0_18 = arith.constant 0 : index
      %c0_19 = arith.constant 0 : index
      %c0_20 = arith.constant 0 : index
      %24 = vector.load %arg3[%c0_18, %c0_19, %c0_20] : memref<1x8x32xf32, #tpu.memory_space<vmem>>, vector<1x8x32xf32>
      %25 = vector.shape_cast %24 : vector<1x8x32xf32> to vector<8x32xf32>
      %c0_21 = arith.constant 0 : index
      %c0_22 = arith.constant 0 : index
      %26 = vector.load %arg4[%c0_21, %c0_22] : memref<1x32xf32, #tpu.memory_space<vmem>>, vector<1x32xf32>
      %27 = arith.mulf %25, %25 : vector<8x32xf32>
      %cst_23 = arith.constant dense<0.000000e+00> : vector<8xf32>
      %28 = vector.multi_reduction <add>, %27, %cst_23 [1] : vector<8x32xf32> to vector<8xf32>
      %29 = vector.shape_cast %28 : vector<8xf32> to vector<8x1xf32>
      %cst_24 = arith.constant 3.200000e+01 : f32
      %30 = vector.broadcast %cst_24 : f32 to vector<8x1xf32>
      %31 = arith.divf %29, %30 : vector<8x1xf32>
      %cst_25 = arith.constant 9.99999997E-7 : f32
      %32 = vector.broadcast %cst_25 : f32 to vector<8x1xf32>
      %33 = arith.addf %31, %32 : vector<8x1xf32>
      %34 = math.rsqrt %33 : vector<8x1xf32>
      %35 = vector.broadcast %34 : vector<8x1xf32> to vector<8x32xf32>
      %36 = arith.mulf %25, %35 : vector<8x32xf32>
      %37 = vector.broadcast %26 : vector<1x32xf32> to vector<8x32xf32>
      %38 = arith.mulf %36, %37 : vector<8x32xf32>
      %39 = arith.truncf %38 : vector<8x32xf32> to vector<8x32xbf16>
      %c0_26 = arith.constant 0 : index
      %c0_27 = arith.constant 0 : index
      %40 = vector.load %arg9[%c0_26, %c0_27] : memref<8x32xbf16, #tpu.memory_space<vmem>>, vector<8x32xbf16>
      tpu.vector_store %arg9[%c0_26, %c0_27], %39 {strides = array<i32>} : memref<8x32xbf16, #tpu.memory_space<vmem>>, vector<8x32xbf16>,
    } else {
    }
    %c0 = arith.constant 0 : index
    %c0_1 = arith.constant 0 : index
    %3 = vector.load %arg9[%c0, %c0_1] : memref<8x32xbf16, #tpu.memory_space<vmem>>, vector<8x32xbf16>
    %c0_2 = arith.constant 0 : index
    %c0_3 = arith.constant 0 : index
    %c0_4 = arith.constant 0 : index
    %4 = vector.load %arg5[%c0_2, %c0_3, %c0_4] : memref<1x32x24xbf16, #tpu.memory_space<vmem>>, vector<1x32x24xbf16>
    %5 = vector.shape_cast %4 : vector<1x32x24xbf16> to vector<32x24xbf16>
    %cst = arith.constant dense<0.000000e+00> : vector<8x24xf32>
    %6 = tpu.matmul %3, %5, %cst {dimension_numbers = #tpu.dot_dimension_numbers<[1], [0], [0], [1], [0, 0, 1, 1], [], []>} : vector<8x32xbf16>, vector<32x24xbf16>, vector<8x24xf32> -> vector<8x24xf32>
    %7 = vector.extract_strided_slice %6 {offsets = [0, 0], sizes = [8, 8], strides = [1, 1]} : vector<8x24xf32> to vector<8x8xf32>
    %cst_5 = arith.constant 0.353553385 : f32
    %8 = vector.broadcast %cst_5 : f32 to vector<8x8xf32>
    %9 = arith.mulf %7, %8 : vector<8x8xf32>
    %10 = arith.truncf %9 : vector<8x8xf32> to vector<8x8xbf16>
    %c0_6 = arith.constant 0 : index
    %c0_7 = arith.constant 0 : index
    %c0_8 = arith.constant 0 : index
    %c0_9 = arith.constant 0 : index
    %11 = vector.load %arg6[%c0_6, %c0_7, %c0_8, %c0_9] : memref<1x1x8x8xbf16, #tpu.memory_space<vmem>>, vector<1x1x8x8xbf16>
    %12 = vector.shape_cast %11 : vector<1x1x8x8xbf16> to vector<8x8xbf16>
    %13 = vector.shape_cast %10 : vector<8x8xbf16> to vector<1x1x8x8xbf16>
    tpu.vector_store %arg6[%c0_6, %c0_7, %c0_8, %c0_9], %13 {strides = array<i32>} : memref<1x1x8x8xbf16, #tpu.memory_space<vmem>>, vector<1x1x8x8xbf16>,
    %14 = vector.extract_strided_slice %6 {offsets = [0, 8], sizes = [8, 8], strides = [1, 1]} : vector<8x24xf32> to vector<8x8xf32>
    %15 = arith.truncf %14 : vector<8x8xf32> to vector<8x8xbf16>
    %c0_10 = arith.constant 0 : index
    %c0_11 = arith.constant 0 : index
    %c0_12 = arith.constant 0 : index
    %c0_13 = arith.constant 0 : index
    %16 = vector.load %arg7[%c0_10, %c0_11, %c0_12, %c0_13] : memref<1x1x8x8xbf16, #tpu.memory_space<vmem>>, vector<1x1x8x8xbf16>
    %17 = vector.shape_cast %16 : vector<1x1x8x8xbf16> to vector<8x8xbf16>
    %18 = vector.shape_cast %15 : vector<8x8xbf16> to vector<1x1x8x8xbf16>
    tpu.vector_store %arg7[%c0_10, %c0_11, %c0_12, %c0_13], %18 {strides = array<i32>} : memref<1x1x8x8xbf16, #tpu.memory_space<vmem>>, vector<1x1x8x8xbf16>,
    %19 = vector.extract_strided_slice %6 {offsets = [0, 16], sizes = [8, 8], strides = [1, 1]} : vector<8x24xf32> to vector<8x8xf32>
    %20 = arith.truncf %19 : vector<8x8xf32> to vector<8x8xbf16>
    %c0_14 = arith.constant 0 : index
    %c0_15 = arith.constant 0 : index
    %c0_16 = arith.constant 0 : index
    %c0_17 = arith.constant 0 : index
    %21 = vector.load %arg8[%c0_14, %c0_15, %c0_16, %c0_17] : memref<1x1x8x8xbf16, #tpu.memory_space<vmem>>, vector<1x1x8x8xbf16>
    %22 = vector.shape_cast %21 : vector<1x1x8x8xbf16> to vector<8x8xbf16>
    %23 = vector.shape_cast %20 : vector<8x8xbf16> to vector<1x1x8x8xbf16>
    tpu.vector_store %arg8[%c0_14, %c0_15, %c0_16, %c0_17], %23 {strides = array<i32>} : memref<1x1x8x8xbf16, #tpu.memory_space<vmem>>, vector<1x1x8x8xbf16>,
    return
  }
  func.func @transform_0(%arg0: i32, %arg1: i32, %arg2: i32) -> (i32, i32, i32) {
    %c0_i32 = arith.constant 0 : i32
    %c0_i32_0 = arith.constant 0 : i32
    return %arg0, %arg1, %c0_i32 : i32, i32, i32
  }
  func.func @transform_1(%arg0: i32, %arg1: i32, %arg2: i32) -> (i32, i32) {
    %c0_i32 = arith.constant 0 : i32
    %c0_i32_0 = arith.constant 0 : i32
    %c0_i32_1 = arith.constant 0 : i32
    return %c0_i32, %c0_i32_0 : i32, i32
  }
  func.func @transform_2(%arg0: i32, %arg1: i32, %arg2: i32) -> (i32, i32, i32) {
    %c0_i32 = arith.constant 0 : i32
    %c0_i32_0 = arith.constant 0 : i32
    %c0_i32_1 = arith.constant 0 : i32
    return %arg2, %c0_i32, %c0_i32_0 : i32, i32, i32
  }
  func.func @transform_3(%arg0: i32, %arg1: i32, %arg2: i32) -> (i32, i32, i32, i32) {
    %c0_i32 = arith.constant 0 : i32
    %c0_i32_0 = arith.constant 0 : i32
    return %arg0, %arg2, %arg1, %c0_i32 : i32, i32, i32, i32
  }
  func.func @transform_4(%arg0: i32, %arg1: i32, %arg2: i32) -> (i32, i32, i32, i32) {
    %c0_i32 = arith.constant 0 : i32
    %c0_i32_0 = arith.constant 0 : i32
    return %arg0, %arg2, %arg1, %c0_i32 : i32, i32, i32, i32
  }
  func.func @transform_5(%arg0: i32, %arg1: i32, %arg2: i32) -> (i32, i32, i32, i32) {
    %c0_i32 = arith.constant 0 : i32
    %c0_i32_0 = arith.constant 0 : i32
    return %arg0, %arg2, %arg1, %c0_i32 : i32, i32, i32, i32
  }
}

</mosaic_0001>

<llo_original>
// kernel: tpu_custom_call.1
$region0: #{tpu_custom_call.1}
  #allocation0 [shape = 'u32[]', space=smem, size = 0x4, offset = 0x4, fixed_abs, tag = 'smem constant byte address 0x4 - core index']
  #allocation1 [shape = 'u32[72,128]{1,0:T(1,128)}', space=vmem, size = 0x9000, scoped, tag = 'internal scratch']
  #allocation2 [shape = 'bf16[8,32]{1,0:T(8,128)(2,1)}', space=vmem, size = 0x800, scoped, tag = 'scratch operand']
  %s0 = inlined_call_operand.vmem [shape: f32[2,8,32], index: 0, kind: input, shape index: {}]
  %s1 = inlined_call_operand.vmem [shape: f32[1,32], index: 1, kind: input, shape index: {}]
  %s2 = inlined_call_operand.vmem [shape: bf16[4,32,24], index: 2, kind: input, shape index: {}]
  %s3 = inlined_call_operand.hbm [shape: bf16[2,4,8,8], index: 3, kind: output, shape index: {0}]
  %s4 = inlined_call_operand.hbm [shape: bf16[2,4,8,8], index: 4, kind: output, shape index: {1}]
  %s5 = inlined_call_operand.hbm [shape: bf16[2,4,8,8], index: 5, kind: output, shape index: {2}]
  %6 = xla_tuple %s3, %s4, %s5
  %s7 = sld [smem:[#allocation0]]
  $region65: #{tpu_custom_call.1} parent=0
    _
  %s9 = ssub.s32 1, %s7
  %s10 = scalar_select 0, %s9, %s7
  $region1: #{tpu_custom_call.1} parent=0
    #allocation3 [shape = 'u8[4096]{0}', space=vmem, size = 0x1000, scoped, tag = 'output window, operand 0']
    #allocation4 [shape = 's32[2]{0}', space=sflag, size = 0x8, scoped, tag = 'scoped memory for tpu_custom_call.1']
    #allocation5 [shape = 'u8[4096]{0}', space=vmem, size = 0x1000, scoped, tag = 'output window, operand 1']
    #allocation6 [shape = 's32[2]{0}', space=sflag, size = 0x8, scoped, tag = 'scoped memory for tpu_custom_call.1']
    #allocation7 [shape = 'u8[4096]{0}', space=vmem, size = 0x1000, scoped, tag = 'output window, operand 2']
    %11 = vsyncpa [#allocation4], 0
    %s12 = scalar_lea.sflag [#allocation4], 1
    %13 = vsyncpa %s12, 0
    %14 = vsyncpa [#allocation6], 0
    %s15 = scalar_lea.sflag [#allocation6], 1
    %16 = vsyncpa %s15, 0
    loop: start=0, step=1, limit=10
    $region2: #{tpu_custom_call.1} parent=1 // loop_pre_header
      _
    $region3: #{tpu_custom_call.1} parent=1 // loop_header
      %s18 = sphi 0, %s22
      %p19 = scmp.ge.s32.totalorder %s18, 10
      %s25 = sphi 0, %s44
      %s26 = sphi 0, %s40
      %s27 = sphi 0, %s36
      %s28 = sphi 0, %s25
      %s29 = sphi 0, %s26
      %s30 = sphi 0, %s27
      %s31 = sphi 0, %s28
      %s32 = sphi 0, %s29
      %s33 = sphi 0, %s30
      %s49 = sphi 0, %s51
      %s52 = sphi 0, %s49
      %s53 = sphi 0, %s52
      %s69 = sphi 0, %s53
      %s73 = sphi 0, %s73
      %s75 = sphi 0, %s73
      %s76 = sphi 0, %s75
      %s90 = sphi 0, %s76
      %s96 = sphi 0, %s98
      %s99 = sphi 0, %s96
      %s100 = sphi 0, %s99
      %s116 = sphi 0, %s100
      %s126 = sphi 0, %s128
      %s129 = sphi 0, %s126
      %s130 = sphi 0, %s129
      %s146 = sphi 0, %s130
      %s156 = sphi 0, %s158
      %s159 = sphi 0, %s156
      %s160 = sphi 0, %s159
      %s176 = sphi 0, %s160
      %s186 = sphi 0, %s188
      %s189 = sphi 0, %s186
      %s190 = sphi 0, %s189
      %s206 = sphi 0, %s190
    $region4: #{tpu_custom_call.1} parent=1 // loop_header_branch
      %21 = sbr.rel (%p19) target = $region8
    $region5: #{tpu_custom_call.1} parent=1 // loop_body
      %s23 = ssub.s32 %s18, 1
      %s24 = ssub.s32 %s18, 2
      %s34 = sadd.s32 1, %s27
      %p35 = scmp.ge.s32.totalorder %s34, 4
      %s36 = scalar_select %p35, 0, %s34
      %s37 = sadd.s32 1, %s26
      %s38 = scalar_select %p35, %s37, %s26
      %p39 = scmp.ge.s32.totalorder %s38, 1
      %s40 = scalar_select %p39, 0, %s38
      %s41 = sadd.s32 1, %s25
      %s42 = scalar_select %p39, %s41, %s25
      %p43 = scmp.ge.s32.totalorder %s42, 2
      %s44 = scalar_select %p43, 0, %s42
      %s45 = ssub.s32 %s25, %s44
      %s46 = ssub.s32 %s26, %s40
      %s47 = sor.u32 %s45, %s46
      %p48 = scmp.eq.s32.totalorder %s47, 0
      %s50 = sadd.s32 %s49, 1
      %s51 = scalar_select %p48, %s49, %s50
      %p54 = pneg %p48
      %p55 = scmp.eq.s32.totalorder %s18, 7
      %p56 = por %p54, %p55
      %p57 = scmp.ne.s32.totalorder %s49, %s52
      %p58 = scmp.eq.s32.totalorder %s18, 0
      %p59 = por %p57, %p58
      %p60 = scmp.ne.s32.totalorder %s49, %s52
      %p61 = scmp.eq.s32.totalorder %s23, 7
      %p62 = por %p60, %p61
      %p63 = scmp.ne.s32.totalorder %s52, %s53
      %p64 = scmp.eq.s32.totalorder %s23, 0
      %p65 = por %p63, %p64
      %p66 = scmp.ne.s32.totalorder %s52, %s53
      %p67 = scmp.eq.s32.totalorder %s24, 7
      %p68 = por %p66, %p67
      %p70 = scmp.ne.s32.totalorder %s53, %s69
      %p71 = scmp.eq.s32.totalorder %s24, 0
      %p72 = por %p70, %p71
      %s74 = sadd.s32 %s73, 1
      %p77 = scmp.eq.s32.totalorder %s18, 7
      %p78 = scmp.ne.s32.totalorder %s73, %s75
      %p79 = scmp.eq.s32.totalorder %s18, 0
      %p80 = por %p78, %p79
      %p81 = scmp.ne.s32.totalorder %s73, %s75
      %p82 = scmp.eq.s32.totalorder %s23, 7
      %p83 = por %p81, %p82
      %p84 = scmp.ne.s32.totalorder %s75, %s76
      %p85 = scmp.eq.s32.totalorder %s23, 0
      %p86 = por %p84, %p85
      %p87 = scmp.ne.s32.totalorder %s75, %s76
      %p88 = scmp.eq.s32.totalorder %s24, 7
      %p89 = por %p87, %p88
      %p91 = scmp.ne.s32.totalorder %s76, %s90
      %p92 = scmp.eq.s32.totalorder %s24, 0
      %p93 = por %p91, %p92
      %s94 = ssub.s32 %s27, %s36
      %p95 = scmp.eq.s32.totalorder %s94, 0
      %s97 = sadd.s32 %s96, 1
      %s98 = scalar_select %p95, %s96, %s97
      %p101 = pneg %p95
      %p102 = scmp.eq.s32.totalorder %s18, 7
      %p103 = por %p101, %p102
      %p104 = scmp.ne.s32.totalorder %s96, %s99
      %p105 = scmp.eq.s32.totalorder %s18, 0
      %p106 = por %p104, %p105
      %p107 = scmp.ne.s32.totalorder %s96, %s99
      %p108 = scmp.eq.s32.totalorder %s23, 7
      %p109 = por %p107, %p108
      %p110 = scmp.ne.s32.totalorder %s99, %s100
      %p111 = scmp.eq.s32.totalorder %s23, 0
      %p112 = por %p110, %p111
      %p113 = scmp.ne.s32.totalorder %s99, %s100
      %p114 = scmp.eq.s32.totalorder %s24, 7
      %p115 = por %p113, %p114
      %p117 = scmp.ne.s32.totalorder %s100, %s116
      %p118 = scmp.eq.s32.totalorder %s24, 0
      %p119 = por %p117, %p118
      %s120 = ssub.s32 %s25, %s44
      %s121 = ssub.s32 %s27, %s36
      %s122 = sor.u32 %s120, %s121
      %s123 = ssub.s32 %s26, %s40
      %s124 = sor.u32 %s122, %s123
      %p125 = scmp.eq.s32.totalorder %s124, 0
      %s127 = sadd.s32 %s126, 1
      %s128 = scalar_select %p125, %s126, %s127
      %p131 = pneg %p125
      %p132 = scmp.eq.s32.totalorder %s18, 7
      %p133 = por %p131, %p132
      %p134 = scmp.ne.s32.totalorder %s126, %s129
      %p135 = scmp.eq.s32.totalorder %s18, 0
      %p136 = por %p134, %p135
      %p137 = scmp.ne.s32.totalorder %s126, %s129
      %p138 = scmp.eq.s32.totalorder %s23, 7
      %p139 = por %p137, %p138
      %p140 = scmp.ne.s32.totalorder %s129, %s130
      %p141 = scmp.eq.s32.totalorder %s23, 0
      %p142 = por %p140, %p141
      %p143 = scmp.ne.s32.totalorder %s129, %s130
      %p144 = scmp.eq.s32.totalorder %s24, 7
      %p145 = por %p143, %p144
      %p147 = scmp.ne.s32.totalorder %s130, %s146
      %p148 = scmp.eq.s32.totalorder %s24, 0
      %p149 = por %p147, %p148
      %s150 = ssub.s32 %s25, %s44
      %s151 = ssub.s32 %s27, %s36
      %s152 = sor.u32 %s150, %s151
      %s153 = ssub.s32 %s26, %s40
      %s154 = sor.u32 %s152, %s153
      %p155 = scmp.eq.s32.totalorder %s154, 0
      %s157 = sadd.s32 %s156, 1
      %s158 = scalar_select %p155, %s156, %s157
      %p161 = pneg %p155
      %p162 = scmp.eq.s32.totalorder %s18, 7
      %p163 = por %p161, %p162
      %p164 = scmp.ne.s32.totalorder %s156, %s159
      %p165 = scmp.eq.s32.totalorder %s18, 0
      %p166 = por %p164, %p165
      %p167 = scmp.ne.s32.totalorder %s156, %s159
      %p168 = scmp.eq.s32.totalorder %s23, 7
      %p169 = por %p167, %p168
      %p170 = scmp.ne.s32.totalorder %s159, %s160
      %p171 = scmp.eq.s32.totalorder %s23, 0
      %p172 = por %p170, %p171
      %p173 = scmp.ne.s32.totalorder %s159, %s160
      %p174 = scmp.eq.s32.totalorder %s24, 7
      %p175 = por %p173, %p174
      %p177 = scmp.ne.s32.totalorder %s160, %s176
      %p178 = scmp.eq.s32.totalorder %s24, 0
      %p179 = por %p177, %p178
      %s180 = ssub.s32 %s25, %s44
      %s181 = ssub.s32 %s27, %s36
      %s182 = sor.u32 %s180, %s181
      %s183 = ssub.s32 %s26, %s40
      %s184 = sor.u32 %s182, %s183
      %p185 = scmp.eq.s32.totalorder %s184, 0
      %s187 = sadd.s32 %s186, 1
      %s188 = scalar_select %p185, %s186, %s187
      %p191 = pneg %p185
      %p192 = scmp.eq.s32.totalorder %s18, 7
      %p193 = por %p191, %p192
      %p194 = scmp.ne.s32.totalorder %s186, %s189
      %p195 = scmp.eq.s32.totalorder %s18, 0
      %p196 = por %p194, %p195
      %p197 = scmp.ne.s32.totalorder %s186, %s189
      %p198 = scmp.eq.s32.totalorder %s23, 7
      %p199 = por %p197, %p198
      %p200 = scmp.ne.s32.totalorder %s189, %s190
      %p201 = scmp.eq.s32.totalorder %s23, 0
      %p202 = por %p200, %p201
      %p203 = scmp.ne.s32.totalorder %s189, %s190
      %p204 = scmp.eq.s32.totalorder %s24, 7
      %p205 = por %p203, %p204
      %p207 = scmp.ne.s32.totalorder %s190, %s206
      %p208 = scmp.eq.s32.totalorder %s24, 0
      %p209 = por %p207, %p208
      %p210 = scmp.le.s32.totalorder 1, %s18
      %p211 = scmp.lt.s32.totalorder %s18, 9
      %p212 = pnand %p210, %p211
      %p213 = pneg %p212
      // Predicated region
      $region9: #{tpu_custom_call.1} parent=5 // pred_check
        _
      $region10: #{tpu_custom_call.1} parent=5 // pred_check_branch
        %215 = sbr.rel (%p212) target = $region12
      $region11: #{tpu_custom_call.1} parent=5 // pred_region
        %s216 = ssub.s32 %s18, 1
        // Predicated region
        $region13: #{tpu_custom_call.1} parent=11 // pred_check
          %p217 = pneg %p86
        $region14: #{tpu_custom_call.1} parent=11 // pred_check_branch
          %219 = sbr.rel (%p217) target = $region16
        $region15: #{tpu_custom_call.1} parent=11 // pred_region
          _
        $region16: #{tpu_custom_call.1} parent=11 // pred_fallthru
          _
      $region12: #{tpu_custom_call.1} parent=5 // pred_fallthru
        _
      %p220 = scmp.lt.s32.totalorder %s18, 8
      // Predicated region
      $region17: #{tpu_custom_call.1} parent=5 // pred_check
        %p221 = pneg %p220
      $region18: #{tpu_custom_call.1} parent=5 // pred_check_branch
        %223 = sbr.rel (%p221) target = $region20
      $region19: #{tpu_custom_call.1} parent=5 // pred_region
        // Predicated region
        $region21: #{tpu_custom_call.1} parent=19 // pred_check
          %p224 = pneg %p59
        $region22: #{tpu_custom_call.1} parent=19 // pred_check_branch
          %226 = sbr.rel (%p224) target = $region24
        $region23: #{tpu_custom_call.1} parent=19 // pred_region
          %p227 = scmp.lt.s32.totalorder %s25, 1
          %s228 = scalar_select %p227, %s25, 1
          %p229 = scmp.lt.s32.totalorder %s26, 0
          %s230 = scalar_select %p229, %s26, 0
          %s231 = sadd.s32 %s230, %s228
          %s232 = smul.addr %s231, 8
          %s233 = scalar_lea.vmem %s0, %s232
        $region24: #{tpu_custom_call.1} parent=19 // pred_fallthru
          _
        // Predicated region
        $region25: #{tpu_custom_call.1} parent=19 // pred_check
          %p234 = pneg %p106
        $region26: #{tpu_custom_call.1} parent=19 // pred_check_branch
          %236 = sbr.rel (%p234) target = $region28
        $region27: #{tpu_custom_call.1} parent=19 // pred_region
          %p237 = scmp.lt.s32.totalorder %s27, 3
          %s238 = scalar_select %p237, %s27, 3
          %s239 = smul.addr %s238, 4
          %s240 = smul.addr %s239, 4
          %s241 = scalar_lea.vmem %s2, %s240
        $region28: #{tpu_custom_call.1} parent=19 // pred_fallthru
          _
      $region20: #{tpu_custom_call.1} parent=5 // pred_fallthru
        _
      %p242 = scmp.le.s32.totalorder 1, %s18
      %p243 = scmp.lt.s32.totalorder %s18, 9
      %p244 = pnand %p242, %p243
      %p245 = pneg %p244
      // Predicated region
      $region29: #{tpu_custom_call.1} parent=5 // pred_check
        _
      $region30: #{tpu_custom_call.1} parent=5 // pred_check_branch
        %247 = sbr.rel (%p244) target = $region32
      $region31: #{tpu_custom_call.1} parent=5 // pred_region
        %s248 = ssub.s32 %s18, 1
        %p249 = scmp.lt.s32.totalorder %s28, 1
        %s250 = scalar_select %p249, %s28, 1
        %p251 = scmp.lt.s32.totalorder %s29, 0
        %s252 = scalar_select %p251, %s29, 0
        %s253 = sadd.s32 %s252, %s250
        %s254 = smul.addr %s253, 8
        %s255 = scalar_lea.vmem %s0, %s254
        %p256 = pneg %p65
        %p257 = pneg %p62
        %p258 = pneg %p86
        %p259 = pneg %p83
        %p260 = scmp.lt.s32.totalorder %s30, 3
        %s261 = scalar_select %p260, %s30, 3
        %s262 = smul.addr %s261, 4
        %s263 = smul.addr %s262, 4
        %s264 = scalar_lea.vmem %s2, %s263
        %p265 = pneg %p112
        %p266 = pneg %p109
        %p267 = pneg %p142
        %p268 = pneg %p139
        %s269 = sand.u32 %s129, 1
        %s270 = scalar_lea.sflag [#allocation4], %s269
        %s271 = sand.u32 %s129, 1
        %s272 = smul.addr %s271, 4
        %s273 = scalar_lea.vmem [#allocation3], %s272
        %p274 = pneg %p172
        %p275 = pneg %p169
        %s276 = sand.u32 %s23, 1
        %s277 = scalar_lea.sflag [#allocation6], %s276
        %s278 = sand.u32 %s159, 1
        %s279 = smul.addr %s278, 4
        %s280 = scalar_lea.vmem [#allocation5], %s279
        %p281 = pneg %p202
        %p282 = pneg %p199
        %s283 = sand.u32 %s23, 1
        %s284 = scalar_lea.sflag [#allocation6], %s283
        %s285 = sand.u32 %s189, 1
        %s286 = smul.addr %s285, 4
        %s287 = scalar_lea.vmem [#allocation7], %s286
        %p288 = scmp.lt.s32.totalorder %s28, 1
        %s289 = scalar_select %p288, %s28, 1
        %p290 = scmp.lt.s32.totalorder %s29, 0
        %s291 = scalar_select %p290, %s29, 0
        %s292 = sadd.s32 %s291, %s289
        %s293 = smul.addr %s292, 8
        %s294 = scalar_lea.vmem %s0, %s293
        %p295 = scmp.lt.s32.totalorder %s30, 3
        %s296 = scalar_select %p295, %s30, 3
        %s297 = smul.addr %s296, 4
        %s298 = smul.addr %s297, 4
        %s299 = scalar_lea.vmem %s2, %s298
        %p301 = scmp.eq.s32.totalorder %s30, 0
        // Predicated region
        $region33: #{tpu_custom_call.1} parent=31 // pred_check
          %p302 = pneg %p301
        $region34: #{tpu_custom_call.1} parent=31 // pred_check_branch
          %304 = sbr.rel (%p302) target = $region36
        $region35: #{tpu_custom_call.1} parent=31 // pred_region
          %v305 = vld [vmem:[%s294] sm:$0xff]
          %v306 = vld [vmem:[%s1] sm:$0x1]
          %v307 = vmul.f32 %v305, %v305
          %vm308 = vcmask 261120
          %v309 = vsel %vm308, %v307, 0.0
          %310 = vadd.xlane.f32.xlu0 %v309
          %v311 = vpop.xlane.xlu0 %310
          %v312 = vrcp.pop 32.0
          %v313 = vmul.f32 32.0, %v312
          %v314 = vsub.f32 1.0, %v313
          %v315 = vmul.f32 %v312, %v314
          %v316 = vadd.f32 %v312, %v315
          %vm317 = vweird.f32 %v312
          %v318 = vsel %vm317, %v312, %v316
          %v319 = vmul.f32 %v311, %v318
          %v320 = vadd.f32 %v319, 1e-06
          %v321 = vrsqrt.pop %v320
          %v322 = vmul.f32 %v321, %v320
          %v323 = vmul.f32 %v322, %v321
          %v324 = vmul.f32 0.5, %v323
          %v325 = vsub.f32 1.5, %v324
          %v326 = vmul.f32 %v321, %v325
          %vm327 = vweird.f32 %v320
          %vm328 = vweird.f32 %v321
          %vm329 = vmor %vm327, %vm328
          %v330 = vsel %vm329, %v321, %v326
          %v331 = vmul.f32 %v305, %v330
          %v333 = vperm.slane %v306, 0
          %v335 = vmul.f32 %v331, %v333
          %v336 = vpack.c.bf16 %v335, %v335
          %vm337 = vcmask 257024
          %338 = vst.msk [vmem:[#allocation2] sm:$0xf] %vm337, %v336
        $region36: #{tpu_custom_call.1} parent=31 // pred_fallthru
          _
        %v339 = vld [vmem:[#allocation2] sm:$0xf]
        %v340 = vld [vmem:[%s299] sm:$0xf]
        %v341 = vld [vmem:[%s299 + $0x4] sm:$0xf]
        %v342 = vld [vmem:[%s299 + $0x8] sm:$0xf]
        %v343 = vld [vmem:[%s299 + $0xc] sm:$0xf]
        %v348 = vunpack.c.l.b16 %v340
        %v349 = vunpack.c.l.b16 %v341
        %v350 = vunpack.c.l.b16 %v342
        %v351 = vunpack.c.l.b16 %v343
        %v352 = vpack.c.b16 %v349, %v348
        %v353 = vpack.c.b16 %v351, %v350
        %vm356 = vcmask 261120
        %v358 = vsel %vm356, %v339, 0
        %360 = vmatpush.bf16.msra.mxu0 0
        %361 = vmatpush.bf16.msra.mxu0 0
        %362 = vmatpush.bf16.msra.mxu0 0
        %363 = vmatpush.bf16.msra.mxu0 0
        %364 = vmatpush.bf16.msra.mxu0 0
        %365 = vmatpush.bf16.msra.mxu0 0
        %366 = vmatpush.bf16.msra.mxu0 %v353
        %367 = vmatpush.bf16.msra.mxu0 %v352
        %368 = vmatmul.bf16.gmra.mxu0 %v358
        %v369 = vpop.f32.mrf.mxu0
        %v370 = vadd.f32 0.0, %v369
        %v371 = vpop.f32.mrf.mxu0
        %372 = vdwg.mxu0
        %v373 = vmul.f32 %v370, 0.35355338
        %v374 = vpack.c.bf16 %v373, %v373
        %vm375 = vcmask 60416
        %376 = vst.msk [vmem:[%s273] sm:$0xf] %vm375, %v374
        %v377 = vpack.c.bf16 %v370, %v370
        %379 = vrot.lane.b32.xlu0 %v377, 120
        %v380 = vpop.permute.xlu0 %379
        %382 = vst.msk [vmem:[%s280] sm:$0xf] %vm375, %v380
        %383 = vrot.lane.b32.xlu0 %v377, 112
        %v384 = vpop.permute.xlu0 %383
        %386 = vst.msk [vmem:[%s287] sm:$0xf] %vm375, %v384
        %s387 = sand.u32 %s129, 1
        %s388 = scalar_lea.sflag [#allocation4], %s387
        %s389 = sand.u32 %s129, 1
        %s390 = smul.addr %s389, 4
        %s391 = scalar_lea.vmem [#allocation3], %s390
        %s392 = sand.u32 %s23, 1
        %s393 = scalar_lea.sflag [#allocation6], %s392
        %s394 = sand.u32 %s159, 1
        %s395 = smul.addr %s394, 4
        %s396 = scalar_lea.vmem [#allocation5], %s395
        %s397 = sand.u32 %s23, 1
        %s398 = scalar_lea.sflag [#allocation6], %s397
        %s399 = sand.u32 %s189, 1
        %s400 = smul.addr %s399, 4
        %s401 = scalar_lea.vmem [#allocation7], %s400
        // Predicated region
        $region37: #{tpu_custom_call.1} parent=31 // pred_check
          %p402 = pneg %p139
        $region38: #{tpu_custom_call.1} parent=31 // pred_check_branch
          %404 = sbr.rel (%p402) target = $region40
        $region39: #{tpu_custom_call.1} parent=31 // pred_region
          %406 = vsyncadd %s388, 0
          %s407 = sadd.s32 %s29, %s30
          %s408 = smul.addr %s28, 4
          %s409 = sadd.s32 %s407, %s408
          %s410 = smul.addr %s409, 4
          %s411 = scalar_lea.hbm %s3, %s410
          %s413 = sshll.u32 %s391, 4
          %s414 = int_to_ptr.vmem [resolvable:$true] %s413
          %s415 = sshll.u32 %s411, 4
          %s416 = int_to_ptr.hbm [resolvable:$true] %s415
          %418 = dma.vmem_to_hbm [thread:$0]  %s414, 64, %s416, %s388
        $region40: #{tpu_custom_call.1} parent=31 // pred_fallthru
          _
        // Predicated region
        $region41: #{tpu_custom_call.1} parent=31 // pred_check
          %p419 = pneg %p169
        $region42: #{tpu_custom_call.1} parent=31 // pred_check_branch
          %421 = sbr.rel (%p419) target = $region44
        $region43: #{tpu_custom_call.1} parent=31 // pred_region
          %423 = vsyncadd %s393, 0
          %s424 = sadd.s32 %s29, %s30
          %s425 = smul.addr %s28, 4
          %s426 = sadd.s32 %s424, %s425
          %s427 = smul.addr %s426, 4
          %s428 = scalar_lea.hbm %s4, %s427
          %s430 = sshll.u32 %s396, 4
          %s431 = int_to_ptr.vmem [resolvable:$true] %s430
          %s432 = sshll.u32 %s428, 4
          %s433 = int_to_ptr.hbm [resolvable:$true] %s432
          %435 = dma.vmem_to_hbm [thread:$0]  %s431, 64, %s433, %s393
        $region44: #{tpu_custom_call.1} parent=31 // pred_fallthru
          _
        // Predicated region
        $region45: #{tpu_custom_call.1} parent=31 // pred_check
          %p436 = pneg %p199
        $region46: #{tpu_custom_call.1} parent=31 // pred_check_branch
          %438 = sbr.rel (%p436) target = $region48
        $region47: #{tpu_custom_call.1} parent=31 // pred_region
          %440 = vsyncadd %s398, 0
          %s441 = sadd.s32 %s29, %s30
          %s442 = smul.addr %s28, 4
          %s443 = sadd.s32 %s441, %s442
          %s444 = smul.addr %s443, 4
          %s445 = scalar_lea.hbm %s5, %s444
          %s447 = sshll.u32 %s401, 4
          %s448 = int_to_ptr.vmem [resolvable:$true] %s447
          %s449 = sshll.u32 %s445, 4
          %s450 = int_to_ptr.hbm [resolvable:$true] %s449
          %452 = dma.vmem_to_hbm [thread:$0]  %s448, 64, %s450, %s398
        $region48: #{tpu_custom_call.1} parent=31 // pred_fallthru
          _
      $region32: #{tpu_custom_call.1} parent=5 // pred_fallthru
        _
      %p453 = scmp.le.s32.totalorder 2, %s18
      // Predicated region
      $region49: #{tpu_custom_call.1} parent=5 // pred_check
        %p454 = pneg %p453
      $region50: #{tpu_custom_call.1} parent=5 // pred_check_branch
        %456 = sbr.rel (%p454) target = $region52
      $region51: #{tpu_custom_call.1} parent=5 // pred_region
        %s457 = ssub.s32 %s18, 2
        // Predicated region
        $region53: #{tpu_custom_call.1} parent=51 // pred_check
          %p458 = pneg %p145
        $region54: #{tpu_custom_call.1} parent=51 // pred_check_branch
          %460 = sbr.rel (%p458) target = $region56
        $region55: #{tpu_custom_call.1} parent=51 // pred_region
          %s461 = sand.u32 %s130, 1
          %s462 = scalar_lea.sflag [#allocation4], %s461
          %s463 = sand.u32 %s130, 1
          %s464 = smul.addr %s463, 4
          %s465 = scalar_lea.vmem [#allocation3], %s464
          %467 = dma.done %s462, 64
        $region56: #{tpu_custom_call.1} parent=51 // pred_fallthru
          _
        // Predicated region
        $region57: #{tpu_custom_call.1} parent=51 // pred_check
          %p468 = pneg %p175
        $region58: #{tpu_custom_call.1} parent=51 // pred_check_branch
          %470 = sbr.rel (%p468) target = $region60
        $region59: #{tpu_custom_call.1} parent=51 // pred_region
          %s471 = sand.u32 %s24, 1
          %s472 = scalar_lea.sflag [#allocation6], %s471
          %s473 = sand.u32 %s160, 1
          %s474 = smul.addr %s473, 4
          %s475 = scalar_lea.vmem [#allocation5], %s474
          %477 = dma.done %s472, 64
        $region60: #{tpu_custom_call.1} parent=51 // pred_fallthru
          _
        // Predicated region
        $region61: #{tpu_custom_call.1} parent=51 // pred_check
          %p478 = pneg %p205
        $region62: #{tpu_custom_call.1} parent=51 // pred_check_branch
          %480 = sbr.rel (%p478) target = $region64
        $region63: #{tpu_custom_call.1} parent=51 // pred_region
          %s481 = sand.u32 %s24, 1
          %s482 = scalar_lea.sflag [#allocation6], %s481
          %s483 = sand.u32 %s190, 1
          %s484 = smul.addr %s483, 4
          %s485 = scalar_lea.vmem [#allocation7], %s484
          %487 = dma.done %s482, 64
        $region64: #{tpu_custom_call.1} parent=51 // pred_fallthru
          _
      $region52: #{tpu_custom_call.1} parent=5 // pred_fallthru
        _
    $region6: #{tpu_custom_call.1} parent=1 // loop_footer
      %s22 = sadd.s32 1, %s18
    $region7: #{tpu_custom_call.1} parent=1 // loop_footer_branch
      %17 = sbr.rel target = $region3
    $region8: #{tpu_custom_call.1} parent=1 // loop_exit
      _
    %488 = vsyncpa [#allocation4], 1
    %s489 = scalar_lea.sflag [#allocation4], 1
    %490 = vsyncpa %s489, 1
    %491 = vsyncpa [#allocation6], 1
    %s492 = scalar_lea.sflag [#allocation6], 1
    %493 = vsyncpa %s492, 1

</llo_original>
